<compile_context>
chip_gen: v5e
topology: v5e:2x2
jax: 0.10.0
libtpu: 0.0.40
codegen_flags: <defaults>
</compile_context>

<pallas_src>
import functools
import math

import jax
import jax.numpy as jnp
from jax.experimental import pallas as pl
from jax.experimental.pallas import tpu as pltpu


def conv_mgu_kernel(x_ref, h_ref, wx_ref, wfh_ref, wch_ref, b_ref, o_ref,
                    *, gate_dtype):
    # x_ref  : (1, C_in,  T)   input tile  (channels on sublanes, spatial on lanes)
    # h_ref  : (1, C_hid, T)   hidden tile
    # wx_ref : (2*C_hid, C_in) stacked x-side weights [0.5*W_f_x ; W_c_x]
    # wfh_ref: (C_hid, C_hid)  0.5 * forget weights acting on h
    # wch_ref: (C_hid, C_hid)  candidate weights acting on h*forget
    # b_ref  : (C_hid, 2)      packed biases: [:,0]=0.5*b_forget, [:,1]=b_cand
    c_hid = h_ref.shape[1]
    T = x_ref.shape[2]
    # Two independent lane-aligned sub-tiles -> MXU / EUP-VPU overlap.
    n_sub = 2 if (T % 256 == 0) else 1
    sub_t = T // n_sub

    wx = wx_ref[...]
    wfh = wfh_ref[...]
    wch = wch_ref[...]
    b = b_ref[...]                      # (C_hid, 2), f32
    b_f = b[:, 0:1]                     # (C_hid, 1) -> lane-broadcast
    b_c = b[:, 1:2]
    half = jnp.asarray(0.5, gate_dtype)

    for s in range(n_sub):              # static 2-unroll: independent sub-tiles
        t0 = s * sub_t
        x = x_ref[0, :, pl.ds(t0, sub_t)]            # (C_in,  sub_t)
        h = h_ref[0, :, pl.ds(t0, sub_t)]            # (C_hid, sub_t)

        # Single stacked x-side matmul feeds both gates.
        pre_x = jnp.dot(wx, x, preferred_element_type=jnp.float32)  # (2C_hid, sub_t)

        # forget = sigmoid(W_f @ [x;h] + b_f) = 0.5*tanh(0.5*(...)) + 0.5
        # (the 0.5 pre-activation scale is already folded into wx/wfh/b_f)
        pre_f = (pre_x[:c_hid]
                 + jnp.dot(wfh, h, preferred_element_type=jnp.float32)
                 + b_f).astype(gate_dtype)
        forget = half * jnp.tanh(pre_f) + half

        h_g = h.astype(gate_dtype)
        h_forget = h_g * forget

        # candidate = tanh(W_c @ [x ; h*forget] + b_c)
        pre_c = (pre_x[c_hid:]
                 + jnp.dot(wch, h_forget.astype(wch.dtype),
                           preferred_element_type=jnp.float32)
                 + b_c).astype(gate_dtype)
        cand = jnp.tanh(pre_c)

        # (1 - f) * h + f * c  ==  h + f * (c - h)   (saves one full-tile multiply)
        out = h_g + forget * (cand - h_g)
        o_ref[0, :, pl.ds(t0, sub_t)] = out.astype(o_ref.dtype)


def conv_mgu_cell_forward(x, hidden, w_f, b_f, w_c, b_c, *,
                          tile_hw=None, gate_compute_dtype=None):
    """convMGUCell forward (1x1 convs).

    x:      (B, C_in,  H, W)  NCHW
    hidden: (B, C_hid, H, W)  NCHW
    w_f, w_c: (C_hid, C_in + C_hid, 1, 1) conv weights
    b_f, b_c: (C_hid,) biases
    gate_compute_dtype: dtype for the transcendental/elementwise gate math.
        Default float32 (faithful to the PyTorch forward); jnp.bfloat16 is
        recommended on v6e/v7x (packed-bf16 EUP/VPU) when a small accuracy
        loss on the forward activations is acceptable.
    """
    B, C_in, H, W = x.shape
    C_hid = hidden.shape[1]
    HW = H * W
    dt = x.dtype
    itemsize = jnp.dtype(dt).itemsize
    gate_dtype = jnp.dtype(gate_compute_dtype or jnp.float32)

    def _round_up(a, m):
        return ((a + m - 1) // m) * m

    # Per-generation sizing.
    try:
        kind = jax.devices()[0].device_kind.lower()
    except Exception:
        kind = ""
    is_v7 = ("v7" in kind) or ("7x" in kind)
    phys_vmem = (64 << 20) if is_v7 else (128 << 20)

    per_lane_bytes = (C_in + 2 * C_hid) * itemsize      # x + h + out, per lane

    if tile_hw is None:
        # Target ~1/4 of physical VMEM for the double-buffered (x, h, out) tiles.
        budget = phys_vmem // 4
        tile_hw = (budget // (2 * per_lane_bytes) // 256) * 256
        tile_hw = int(min(16384, max(256, tile_hw)))
    tile_hw = _round_up(min(tile_hw, _round_up(HW, 128)), 128)
    if is_v7 and B == 1 and HW > 128:
        # Keep both TensorCores busy: >= 2 spatial tiles when batch == 1.
        tile_hw = min(tile_hw, _round_up((HW + 1) // 2, 128))

    HW_pad = _round_up(HW, tile_hw)

    # Contiguous reshapes only — no NCHW<->NHWC transposes anywhere.
    x3 = x.reshape(B, C_in, HW)
    h3 = hidden.reshape(B, C_hid, HW)
    if HW_pad != HW:
        pad = HW_pad - HW
        x3 = jnp.pad(x3, ((0, 0), (0, 0), (0, pad)))
        h3 = jnp.pad(h3, ((0, 0), (0, 0), (0, pad)))

    # Weight prep (tiny): split conv weights into x-side / h-side halves,
    # stack the two x-side gate weights along M, and fold the 0.5 sigmoid
    # rescale (sigmoid(z) = 0.5*tanh(z/2) + 0.5) into the forget-gate params.
    w_f2 = w_f.reshape(C_hid, C_in + C_hid)
    w_c2 = w_c.reshape(C_hid, C_in + C_hid)
    wfi, wfh = 0.5 * w_f2[:, :C_in], 0.5 * w_f2[:, C_in:]
    wci, wch = w_c2[:, :C_in], w_c2[:, C_in:]
    wx = jnp.concatenate([wfi, wci], axis=0).astype(dt)          # (2*C_hid, C_in)
    wfh = wfh.astype(dt)
    wch = wch.astype(dt)
    b_packed = jnp.stack([0.5 * b_f, b_c], axis=1).astype(jnp.float32)  # (C_hid, 2)

    grid = (B, HW_pad // tile_hw)

    data_spec_in = pl.BlockSpec((1, C_in, tile_hw), lambda b, j: (b, 0, j))
    data_spec_hid = pl.BlockSpec((1, C_hid, tile_hw), lambda b, j: (b, 0, j))
    wx_spec = pl.BlockSpec((2 * C_hid, C_in), lambda b, j: (0, 0))
    w_hid_spec = pl.BlockSpec((C_hid, C_hid), lambda b, j: (0, 0))
    bias_spec = pl.BlockSpec((C_hid, 2), lambda b, j: (0, 0))

    # VMEM: double-buffered (x, h, out) tiles + resident params + slack.
    tile_bytes = tile_hw * per_lane_bytes
    param_bytes = (2 * C_hid * C_in + 2 * C_hid * C_hid) * itemsize + 8 * C_hid
    needed = 2 * tile_bytes + 4 * param_bytes + (4 << 20)
    vmem_cap = (48 << 20) if is_v7 else (100 << 20)
    vmem_limit = int(min(vmem_cap, max(32 << 20, needed)))

    kernel = functools.partial(conv_mgu_kernel, gate_dtype=gate_dtype)

    out3 = pl.pallas_call(
        kernel,
        out_shape=jax.ShapeDtypeStruct((B, C_hid, HW_pad), dt),
        grid=grid,
        in_specs=[data_spec_in, data_spec_hid,
                  wx_spec, w_hid_spec, w_hid_spec, bias_spec],
        out_specs=data_spec_hid,
        compiler_params=pltpu.CompilerParams(
            dimension_semantics=("parallel", "parallel"),
            vmem_limit_bytes=vmem_limit),
    )(x3, h3, wx, wfh, wch, b_packed)

    if HW_pad != HW:
        out3 = out3[:, :, :HW]
    return out3.reshape(B, C_hid, H, W)


def _xavier_uniform(key, shape, gain):
    # torch xavier_uniform_ fan computation for a 4D (out, in, kh, kw) tensor.
    fan_out = shape[0] * shape[2] * shape[3]
    fan_in = shape[1] * shape[2] * shape[3]
    bound = gain * (6.0 / (fan_in + fan_out)) ** 0.5
    return jax.random.uniform(key, shape, jnp.float32, -bound, bound)


def _reference(x, hidden, w_f, b_f, w_c, b_c):
    # Pure-JAX reference of the PyTorch forward (1x1 conv == einsum over channels).
    C_hid = hidden.shape[1]
    w_f2 = w_f.reshape(C_hid, -1)
    w_c2 = w_c.reshape(C_hid, -1)
    cat1 = jnp.concatenate([x, hidden], axis=1)
    forget = jax.nn.sigmoid(jnp.einsum('bchw,oc->bohw', cat1, w_f2)
                            + b_f[None, :, None, None])
    cat2 = jnp.concatenate([x, hidden * forget], axis=1)
    cand = jnp.tanh(jnp.einsum('bchw,oc->bohw', cat2, w_c2)
                    + b_c[None, :, None, None])
    return (1.0 - forget) * hidden + forget * cand


if __name__ == "__main__":
    key = jax.random.PRNGKey(0)
    B, C_in, C_hid, H, W = 2, 4, 32, 16, 16     # H*W = 256 (lane-aligned)

    keys = jax.random.split(key, 5)
    gain_relu = math.sqrt(2.0)                  # calculate_gain('relu')

    x = jax.random.normal(keys[0], (B, C_in, H, W), jnp.float32)
    hidden = jax.random.normal(keys[1], (B, C_hid, H, W), jnp.float32)

    # Module init: forget gate xavier(gain=relu); candidate gate xavier(gain=1),
    # candidate bias set to constant 1.0 (bias=True); forget bias torch default.
    w_f = _xavier_uniform(keys[2], (C_hid, C_in + C_hid, 1, 1), gain_relu)
    w_c = _xavier_uniform(keys[3], (C_hid, C_in + C_hid, 1, 1), 1.0)
    bb = 1.0 / math.sqrt(C_in + C_hid)
    b_f = jax.random.uniform(keys[4], (C_hid,), jnp.float32, -bb, bb)
    b_c = jnp.ones((C_hid,), jnp.float32)

    ref = _reference(x, hidden, w_f, b_f, w_c, b_c)

    # f32 gate math: faithful to the PyTorch forward.
    out = conv_mgu_cell_forward(x, hidden, w_f, b_f, w_c, b_c)
    out = jax.block_until_ready(out)
    assert out.shape == (B, C_hid, H, W)
    assert jnp.allclose(out, ref, atol=1e-4, rtol=1e-4), "f32 mismatch vs reference"

    # bf16 gate math (v6e/v7x EUP/VPU fast path): loose sanity check.
    out_bf = conv_mgu_cell_forward(x, hidden, w_f, b_f, w_c, b_c,
                                   gate_compute_dtype=jnp.bfloat16)
    out_bf = jax.block_until_ready(out_bf)
    assert float(jnp.max(jnp.abs(out_bf - ref))) < 0.25, "bf16 gate path mismatch"

    print("KERNEL_OK")
</pallas_src>

<mosaic_0001>
module attributes {stable_mosaic.version = 11 : i64} {
  func.func @conv_mgu_kernel(%arg0: i32, %arg1: i32, %arg2: memref<1x4x256xf32, #tpu.memory_space<vmem>>, %arg3: memref<1x32x256xf32, #tpu.memory_space<vmem>>, %arg4: memref<64x4xf32, #tpu.memory_space<vmem>>, %arg5: memref<32x32xf32, #tpu.memory_space<vmem>>, %arg6: memref<32x32xf32, #tpu.memory_space<vmem>>, %arg7: memref<32x2xf32, #tpu.memory_space<vmem>>, %arg8: memref<1x32x256xf32, #tpu.memory_space<vmem>>) attributes {dimension_semantics = [#tpu.dimension_semantics<parallel>, #tpu.dimension_semantics<parallel>], iteration_bounds = array<i64: 2, 1>, scalar_prefetch = 0 : i64, scratch_operands = 0 : i64, tpu.core_type = #tpu.core_type<tc>, window_params = [{transform_indices = @transform_0, window_bounds = array<i64: 1, 4, 256>}, {transform_indices = @transform_1, window_bounds = array<i64: 1, 32, 256>}, {pipeline_mode = #tpu.pipeline_mode<synchronous>, transform_indices = @transform_2, window_bounds = array<i64: 64, 4>}, {pipeline_mode = #tpu.pipeline_mode<synchronous>, transform_indices = @transform_3, window_bounds = array<i64: 32, 32>}, {pipeline_mode = #tpu.pipeline_mode<synchronous>, transform_indices = @transform_4, window_bounds = array<i64: 32, 32>}, {pipeline_mode = #tpu.pipeline_mode<synchronous>, transform_indices = @transform_5, window_bounds = array<i64: 32, 2>}, {transform_indices = @transform_6, window_bounds = array<i64: 1, 32, 256>}]} {
    %c0 = arith.constant 0 : index
    %c0_0 = arith.constant 0 : index
    %0 = vector.load %arg4[%c0, %c0_0] : memref<64x4xf32, #tpu.memory_space<vmem>>, vector<64x4xf32>
    %c0_1 = arith.constant 0 : index
    %c0_2 = arith.constant 0 : index
    %1 = vector.load %arg5[%c0_1, %c0_2] : memref<32x32xf32, #tpu.memory_space<vmem>>, vector<32x32xf32>
    %c0_3 = arith.constant 0 : index
    %c0_4 = arith.constant 0 : index
    %2 = vector.load %arg6[%c0_3, %c0_4] : memref<32x32xf32, #tpu.memory_space<vmem>>, vector<32x32xf32>
    %c0_5 = arith.constant 0 : index
    %c0_6 = arith.constant 0 : index
    %3 = vector.load %arg7[%c0_5, %c0_6] : memref<32x2xf32, #tpu.memory_space<vmem>>, vector<32x2xf32>
    %4 = vector.extract_strided_slice %3 {offsets = [0, 0], sizes = [32, 1], strides = [1, 1]} : vector<32x2xf32> to vector<32x1xf32>
    %5 = vector.extract_strided_slice %3 {offsets = [0, 1], sizes = [32, 1], strides = [1, 1]} : vector<32x2xf32> to vector<32x1xf32>
    %c0_7 = arith.constant 0 : index
    %c0_8 = arith.constant 0 : index
    %c0_9 = arith.constant 0 : index
    %6 = vector.load %arg2[%c0_7, %c0_8, %c0_9] : memref<1x4x256xf32, #tpu.memory_space<vmem>>, vector<1x4x128xf32>
    %7 = vector.shape_cast %6 : vector<1x4x128xf32> to vector<4x128xf32>
    %c0_10 = arith.constant 0 : index
    %c0_11 = arith.constant 0 : index
    %c0_12 = arith.constant 0 : index
    %8 = vector.load %arg3[%c0_10, %c0_11, %c0_12] : memref<1x32x256xf32, #tpu.memory_space<vmem>>, vector<1x32x128xf32>
    %9 = vector.shape_cast %8 : vector<1x32x128xf32> to vector<32x128xf32>
    %cst = arith.constant dense<0.000000e+00> : vector<64x128xf32>
    %10 = tpu.matmul %0, %7, %cst {dimension_numbers = #tpu.dot_dimension_numbers<[1], [0], [0], [1], [0, 0, 1, 1], [], []>} : vector<64x4xf32>, vector<4x128xf32>, vector<64x128xf32> -> vector<64x128xf32>
    %11 = vector.extract_strided_slice %10 {offsets = [0, 0], sizes = [32, 128], strides = [1, 1]} : vector<64x128xf32> to vector<32x128xf32>
    %cst_13 = arith.constant dense<0.000000e+00> : vector<32x128xf32>
    %12 = tpu.matmul %1, %9, %cst_13 {dimension_numbers = #tpu.dot_dimension_numbers<[1], [0], [0], [1], [0, 0, 1, 1], [], []>} : vector<32x32xf32>, vector<32x128xf32>, vector<32x128xf32> -> vector<32x128xf32>
    %13 = arith.addf %11, %12 : vector<32x128xf32>
    %14 = vector.broadcast %4 : vector<32x1xf32> to vector<32x128xf32>
    %15 = arith.addf %13, %14 : vector<32x128xf32>
    %16 = math.tanh %15 : vector<32x128xf32>
    %cst_14 = arith.constant 5.000000e-01 : f32
    %17 = vector.broadcast %cst_14 : f32 to vector<32x128xf32>
    %18 = arith.mulf %17, %16 : vector<32x128xf32>
    %cst_15 = arith.constant 5.000000e-01 : f32
    %19 = vector.broadcast %cst_15 : f32 to vector<32x128xf32>
    %20 = arith.addf %18, %19 : vector<32x128xf32>
    %21 = arith.mulf %9, %20 : vector<32x128xf32>
    %22 = vector.extract_strided_slice %10 {offsets = [32, 0], sizes = [32, 128], strides = [1, 1]} : vector<64x128xf32> to vector<32x128xf32>
    %cst_16 = arith.constant dense<0.000000e+00> : vector<32x128xf32>
    %23 = tpu.matmul %2, %21, %cst_16 {dimension_numbers = #tpu.dot_dimension_numbers<[1], [0], [0], [1], [0, 0, 1, 1], [], []>} : vector<32x32xf32>, vector<32x128xf32>, vector<32x128xf32> -> vector<32x128xf32>
    %24 = arith.addf %22, %23 : vector<32x128xf32>
    %25 = vector.broadcast %5 : vector<32x1xf32> to vector<32x128xf32>
    %26 = arith.addf %24, %25 : vector<32x128xf32>
    %27 = math.tanh %26 : vector<32x128xf32>
    %28 = arith.subf %27, %9 : vector<32x128xf32>
    %29 = arith.mulf %20, %28 : vector<32x128xf32>
    %30 = arith.addf %9, %29 : vector<32x128xf32>
    %c0_17 = arith.constant 0 : index
    %c0_18 = arith.constant 0 : index
    %c0_19 = arith.constant 0 : index
    %31 = vector.load %arg8[%c0_17, %c0_18, %c0_19] : memref<1x32x256xf32, #tpu.memory_space<vmem>>, vector<1x32x128xf32>
    %32 = vector.shape_cast %31 : vector<1x32x128xf32> to vector<32x128xf32>
    %33 = vector.shape_cast %30 : vector<32x128xf32> to vector<1x32x128xf32>
    tpu.vector_store %arg8[%c0_17, %c0_18, %c0_19], %33 {strides = array<i32>} : memref<1x32x256xf32, #tpu.memory_space<vmem>>, vector<1x32x128xf32>,
    %c0_20 = arith.constant 0 : index
    %c0_21 = arith.constant 0 : index
    %c128 = arith.constant 128 : index
    %34 = vector.load %arg2[%c0_20, %c0_21, %c128] : memref<1x4x256xf32, #tpu.memory_space<vmem>>, vector<1x4x128xf32>
    %35 = vector.shape_cast %34 : vector<1x4x128xf32> to vector<4x128xf32>
    %c0_22 = arith.constant 0 : index
    %c0_23 = arith.constant 0 : index
    %c128_24 = arith.constant 128 : index
    %36 = vector.load %arg3[%c0_22, %c0_23, %c128_24] : memref<1x32x256xf32, #tpu.memory_space<vmem>>, vector<1x32x128xf32>
    %37 = vector.shape_cast %36 : vector<1x32x128xf32> to vector<32x128xf32>
    %cst_25 = arith.constant dense<0.000000e+00> : vector<64x128xf32>
    %38 = tpu.matmul %0, %35, %cst_25 {dimension_numbers = #tpu.dot_dimension_numbers<[1], [0], [0], [1], [0, 0, 1, 1], [], []>} : vector<64x4xf32>, vector<4x128xf32>, vector<64x128xf32> -> vector<64x128xf32>
    %39 = vector.extract_strided_slice %38 {offsets = [0, 0], sizes = [32, 128], strides = [1, 1]} : vector<64x128xf32> to vector<32x128xf32>
    %cst_26 = arith.constant dense<0.000000e+00> : vector<32x128xf32>
    %40 = tpu.matmul %1, %37, %cst_26 {dimension_numbers = #tpu.dot_dimension_numbers<[1], [0], [0], [1], [0, 0, 1, 1], [], []>} : vector<32x32xf32>, vector<32x128xf32>, vector<32x128xf32> -> vector<32x128xf32>
    %41 = arith.addf %39, %40 : vector<32x128xf32>
    %42 = vector.broadcast %4 : vector<32x1xf32> to vector<32x128xf32>
    %43 = arith.addf %41, %42 : vector<32x128xf32>
    %44 = math.tanh %43 : vector<32x128xf32>
    %cst_27 = arith.constant 5.000000e-01 : f32
    %45 = vector.broadcast %cst_27 : f32 to vector<32x128xf32>
    %46 = arith.mulf %45, %44 : vector<32x128xf32>
    %cst_28 = arith.constant 5.000000e-01 : f32
    %47 = vector.broadcast %cst_28 : f32 to vector<32x128xf32>
    %48 = arith.addf %46, %47 : vector<32x128xf32>
    %49 = arith.mulf %37, %48 : vector<32x128xf32>
    %50 = vector.extract_strided_slice %38 {offsets = [32, 0], sizes = [32, 128], strides = [1, 1]} : vector<64x128xf32> to vector<32x128xf32>
    %cst_29 = arith.constant dense<0.000000e+00> : vector<32x128xf32>
    %51 = tpu.matmul %2, %49, %cst_29 {dimension_numbers = #tpu.dot_dimension_numbers<[1], [0], [0], [1], [0, 0, 1, 1], [], []>} : vector<32x32xf32>, vector<32x128xf32>, vector<32x128xf32> -> vector<32x128xf32>
    %52 = arith.addf %50, %51 : vector<32x128xf32>
    %53 = vector.broadcast %5 : vector<32x1xf32> to vector<32x128xf32>
    %54 = arith.addf %52, %53 : vector<32x128xf32>
    %55 = math.tanh %54 : vector<32x128xf32>
    %56 = arith.subf %55, %37 : vector<32x128xf32>
    %57 = arith.mulf %48, %56 : vector<32x128xf32>
    %58 = arith.addf %37, %57 : vector<32x128xf32>
    %c0_30 = arith.constant 0 : index
    %c0_31 = arith.constant 0 : index
    %c128_32 = arith.constant 128 : index
    %59 = vector.load %arg8[%c0_30, %c0_31, %c128_32] : memref<1x32x256xf32, #tpu.memory_space<vmem>>, vector<1x32x128xf32>
    %60 = vector.shape_cast %59 : vector<1x32x128xf32> to vector<32x128xf32>
    %61 = vector.shape_cast %58 : vector<32x128xf32> to vector<1x32x128xf32>
    tpu.vector_store %arg8[%c0_30, %c0_31, %c128_32], %61 {strides = array<i32>} : memref<1x32x256xf32, #tpu.memory_space<vmem>>, vector<1x32x128xf32>,
    return
  }
  func.func @transform_0(%arg0: i32, %arg1: i32) -> (i32, i32, i32) {
    %c0_i32 = arith.constant 0 : i32
    %c0_i32_0 = arith.constant 0 : i32
    return %arg0, %c0_i32, %arg1 : i32, i32, i32
  }
  func.func @transform_1(%arg0: i32, %arg1: i32) -> (i32, i32, i32) {
    %c0_i32 = arith.constant 0 : i32
    %c0_i32_0 = arith.constant 0 : i32
    return %arg0, %c0_i32, %arg1 : i32, i32, i32
  }
  func.func @transform_2(%arg0: i32, %arg1: i32) -> (i32, i32) {
    %c0_i32 = arith.constant 0 : i32
    %c0_i32_0 = arith.constant 0 : i32
    %c0_i32_1 = arith.constant 0 : i32
    return %c0_i32, %c0_i32_0 : i32, i32
  }
  func.func @transform_3(%arg0: i32, %arg1: i32) -> (i32, i32) {
    %c0_i32 = arith.constant 0 : i32
    %c0_i32_0 = arith.constant 0 : i32
    %c0_i32_1 = arith.constant 0 : i32
    return %c0_i32, %c0_i32_0 : i32, i32
  }
  func.func @transform_4(%arg0: i32, %arg1: i32) -> (i32, i32) {
    %c0_i32 = arith.constant 0 : i32
    %c0_i32_0 = arith.constant 0 : i32
    %c0_i32_1 = arith.constant 0 : i32
    return %c0_i32, %c0_i32_0 : i32, i32
  }
  func.func @transform_5(%arg0: i32, %arg1: i32) -> (i32, i32) {
    %c0_i32 = arith.constant 0 : i32
    %c0_i32_0 = arith.constant 0 : i32
    %c0_i32_1 = arith.constant 0 : i32
    return %c0_i32, %c0_i32_0 : i32, i32
  }
  func.func @transform_6(%arg0: i32, %arg1: i32) -> (i32, i32, i32) {
    %c0_i32 = arith.constant 0 : i32
    %c0_i32_0 = arith.constant 0 : i32
    return %arg0, %c0_i32, %arg1 : i32, i32, i32
  }
}

</mosaic_0001>

<llo_original>
// kernel: tpu_custom_call.1
$region0: #{tpu_custom_call.1}
  #allocation0 [shape = 'u32[]', space=smem, size = 0x4, offset = 0x4, fixed_abs, tag = 'smem constant byte address 0x4 - core index']
  #allocation1 [shape = 'u32[72,128]{1,0:T(1,128)}', space=vmem, size = 0x9000, scoped, tag = 'internal scratch']
  %s0 = inlined_call_operand.vmem [shape: f32[2,4,256], index: 0, kind: input, shape index: {}]
  %s1 = inlined_call_operand.hbm [shape: f32[2,32,256], index: 1, kind: input, shape index: {}]
  %s2 = inlined_call_operand.vmem [shape: f32[64,4], index: 2, kind: input, shape index: {}]
  %s3 = inlined_call_operand.vmem [shape: f32[32,32], index: 3, kind: input, shape index: {}]
  %s4 = inlined_call_operand.vmem [shape: f32[32,32], index: 4, kind: input, shape index: {}]
  %s5 = inlined_call_operand.vmem [shape: f32[32,2], index: 5, kind: input, shape index: {}]
  %s6 = inlined_call_operand.hbm [shape: f32[2,32,256], index: 6, kind: output, shape index: {}]
  %s7 = sld [smem:[#allocation0]]
  $region61: #{tpu_custom_call.1} parent=0
    _
  %s9 = ssub.s32 1, %s7
  %s10 = scalar_select 0, %s9, %s7
  $region1: #{tpu_custom_call.1} parent=0
    #allocation2 [shape = 'u8[65536]{0}', space=vmem, size = 0x10000, scoped, tag = 'input window, operand 1']
    #allocation3 [shape = 's32[2]{0}', space=sflag, size = 0x8, scoped, tag = 'scoped memory for tpu_custom_call.1']
    #allocation4 [shape = 's32[2]{0}', space=sflag, size = 0x8, scoped, tag = 'scoped memory for tpu_custom_call.1']
    #allocation5 [shape = 'u8[65536]{0}', space=vmem, size = 0x10000, scoped, tag = 'output window, operand 0']
    %11 = vsyncpa [#allocation3], 0
    %s12 = scalar_lea.sflag [#allocation3], 1
    %13 = vsyncpa %s12, 0
    %14 = vsyncpa [#allocation4], 0
    %s15 = scalar_lea.sflag [#allocation4], 1
    %16 = vsyncpa %s15, 0
    loop: start=0, step=1, limit=4
    $region2: #{tpu_custom_call.1} parent=1 // loop_pre_header
      _
    $region3: #{tpu_custom_call.1} parent=1 // loop_header
      %s18 = sphi 0, %s22
      %p19 = scmp.ge.s32.totalorder %s18, 4
      %s25 = sphi 0, %s37
      %s26 = sphi 0, %s33
      %s27 = sphi 0, %s25
      %s28 = sphi 0, %s26
      %s29 = sphi 0, %s27
      %s30 = sphi 0, %s28
      %s42 = sphi 0, %s44
      %s45 = sphi 0, %s42
      %s46 = sphi 0, %s45
      %s62 = sphi 0, %s46
      %s70 = sphi 0, %s72
      %s73 = sphi 0, %s70
      %s74 = sphi 0, %s73
      %s90 = sphi 0, %s74
      %s94 = sphi 0, %s94
      %s96 = sphi 0, %s94
      %s97 = sphi 0, %s96
      %s111 = sphi 0, %s97
      %s115 = sphi 0, %s115
      %s117 = sphi 0, %s115
      %s118 = sphi 0, %s117
      %s132 = sphi 0, %s118
      %s136 = sphi 0, %s136
      %s138 = sphi 0, %s136
      %s139 = sphi 0, %s138
      %s153 = sphi 0, %s139
      %s157 = sphi 0, %s157
      %s159 = sphi 0, %s157
      %s160 = sphi 0, %s159
      %s174 = sphi 0, %s160
      %s182 = sphi 0, %s184
      %s185 = sphi 0, %s182
      %s186 = sphi 0, %s185
      %s202 = sphi 0, %s186
    $region4: #{tpu_custom_call.1} parent=1 // loop_header_branch
      %21 = sbr.rel (%p19) target = $region8
    $region5: #{tpu_custom_call.1} parent=1 // loop_body
      %s23 = ssub.s32 %s18, 1
      %s24 = ssub.s32 %s18, 2
      %s31 = sadd.s32 1, %s26
      %p32 = scmp.ge.s32.totalorder %s31, 1
      %s33 = scalar_select %p32, 0, %s31
      %s34 = sadd.s32 1, %s25
      %s35 = scalar_select %p32, %s34, %s25
      %p36 = scmp.ge.s32.totalorder %s35, 2
      %s37 = scalar_select %p36, 0, %s35
      %s38 = ssub.s32 %s25, %s37
      %s39 = ssub.s32 %s26, %s33
      %s40 = sor.u32 %s38, %s39
      %p41 = scmp.eq.s32.totalorder %s40, 0
      %s43 = sadd.s32 %s42, 1
      %s44 = scalar_select %p41, %s42, %s43
      %p47 = pneg %p41
      %p48 = scmp.eq.s32.totalorder %s18, 1
      %p49 = por %p47, %p48
      %p50 = scmp.ne.s32.totalorder %s42, %s45
      %p51 = scmp.eq.s32.totalorder %s18, 0
      %p52 = por %p50, %p51
      %p53 = scmp.ne.s32.totalorder %s42, %s45
      %p54 = scmp.eq.s32.totalorder %s23, 1
      %p55 = por %p53, %p54
      %p56 = scmp.ne.s32.totalorder %s45, %s46
      %p57 = scmp.eq.s32.totalorder %s23, 0
      %p58 = por %p56, %p57
      %p59 = scmp.ne.s32.totalorder %s45, %s46
      %p60 = scmp.eq.s32.totalorder %s24, 1
      %p61 = por %p59, %p60
      %p63 = scmp.ne.s32.totalorder %s46, %s62
      %p64 = scmp.eq.s32.totalorder %s24, 0
      %p65 = por %p63, %p64
      %s66 = ssub.s32 %s25, %s37
      %s67 = ssub.s32 %s26, %s33
      %s68 = sor.u32 %s66, %s67
      %p69 = scmp.eq.s32.totalorder %s68, 0
      %s71 = sadd.s32 %s70, 1
      %s72 = scalar_select %p69, %s70, %s71
      %p75 = pneg %p69
      %p76 = scmp.eq.s32.totalorder %s18, 1
      %p77 = por %p75, %p76
      %p78 = scmp.ne.s32.totalorder %s70, %s73
      %p79 = scmp.eq.s32.totalorder %s18, 0
      %p80 = por %p78, %p79
      %p81 = scmp.ne.s32.totalorder %s70, %s73
      %p82 = scmp.eq.s32.totalorder %s23, 1
      %p83 = por %p81, %p82
      %p84 = scmp.ne.s32.totalorder %s73, %s74
      %p85 = scmp.eq.s32.totalorder %s23, 0
      %p86 = por %p84, %p85
      %p87 = scmp.ne.s32.totalorder %s73, %s74
      %p88 = scmp.eq.s32.totalorder %s24, 1
      %p89 = por %p87, %p88
      %p91 = scmp.ne.s32.totalorder %s74, %s90
      %p92 = scmp.eq.s32.totalorder %s24, 0
      %p93 = por %p91, %p92
      %s95 = sadd.s32 %s94, 1
      %p98 = scmp.eq.s32.totalorder %s18, 1
      %p99 = scmp.ne.s32.totalorder %s94, %s96
      %p100 = scmp.eq.s32.totalorder %s18, 0
      %p101 = por %p99, %p100
      %p102 = scmp.ne.s32.totalorder %s94, %s96
      %p103 = scmp.eq.s32.totalorder %s23, 1
      %p104 = por %p102, %p103
      %p105 = scmp.ne.s32.totalorder %s96, %s97
      %p106 = scmp.eq.s32.totalorder %s23, 0
      %p107 = por %p105, %p106
      %p108 = scmp.ne.s32.totalorder %s96, %s97
      %p109 = scmp.eq.s32.totalorder %s24, 1
      %p110 = por %p108, %p109
      %p112 = scmp.ne.s32.totalorder %s97, %s111
      %p113 = scmp.eq.s32.totalorder %s24, 0
      %p114 = por %p112, %p113
      %s116 = sadd.s32 %s115, 1
      %p119 = scmp.eq.s32.totalorder %s18, 1
      %p120 = scmp.ne.s32.totalorder %s115, %s117
      %p121 = scmp.eq.s32.totalorder %s18, 0
      %p122 = por %p120, %p121
      %p123 = scmp.ne.s32.totalorder %s115, %s117
      %p124 = scmp.eq.s32.totalorder %s23, 1
      %p125 = por %p123, %p124
      %p126 = scmp.ne.s32.totalorder %s117, %s118
      %p127 = scmp.eq.s32.totalorder %s23, 0
      %p128 = por %p126, %p127
      %p129 = scmp.ne.s32.totalorder %s117, %s118
      %p130 = scmp.eq.s32.totalorder %s24, 1
      %p131 = por %p129, %p130
      %p133 = scmp.ne.s32.totalorder %s118, %s132
      %p134 = scmp.eq.s32.totalorder %s24, 0
      %p135 = por %p133, %p134
      %s137 = sadd.s32 %s136, 1
      %p140 = scmp.eq.s32.totalorder %s18, 1
      %p141 = scmp.ne.s32.totalorder %s136, %s138
      %p142 = scmp.eq.s32.totalorder %s18, 0
      %p143 = por %p141, %p142
      %p144 = scmp.ne.s32.totalorder %s136, %s138
      %p145 = scmp.eq.s32.totalorder %s23, 1
      %p146 = por %p144, %p145
      %p147 = scmp.ne.s32.totalorder %s138, %s139
      %p148 = scmp.eq.s32.totalorder %s23, 0
      %p149 = por %p147, %p148
      %p150 = scmp.ne.s32.totalorder %s138, %s139
      %p151 = scmp.eq.s32.totalorder %s24, 1
      %p152 = por %p150, %p151
      %p154 = scmp.ne.s32.totalorder %s139, %s153
      %p155 = scmp.eq.s32.totalorder %s24, 0
      %p156 = por %p154, %p155
      %s158 = sadd.s32 %s157, 1
      %p161 = scmp.eq.s32.totalorder %s18, 1
      %p162 = scmp.ne.s32.totalorder %s157, %s159
      %p163 = scmp.eq.s32.totalorder %s18, 0
      %p164 = por %p162, %p163
      %p165 = scmp.ne.s32.totalorder %s157, %s159
      %p166 = scmp.eq.s32.totalorder %s23, 1
      %p167 = por %p165, %p166
      %p168 = scmp.ne.s32.totalorder %s159, %s160
      %p169 = scmp.eq.s32.totalorder %s23, 0
      %p170 = por %p168, %p169
      %p171 = scmp.ne.s32.totalorder %s159, %s160
      %p172 = scmp.eq.s32.totalorder %s24, 1
      %p173 = por %p171, %p172
      %p175 = scmp.ne.s32.totalorder %s160, %s174
      %p176 = scmp.eq.s32.totalorder %s24, 0
      %p177 = por %p175, %p176
      %s178 = ssub.s32 %s25, %s37
      %s179 = ssub.s32 %s26, %s33
      %s180 = sor.u32 %s178, %s179
      %p181 = scmp.eq.s32.totalorder %s180, 0
      %s183 = sadd.s32 %s182, 1
      %s184 = scalar_select %p181, %s182, %s183
      %p187 = pneg %p181
      %p188 = scmp.eq.s32.totalorder %s18, 1
      %p189 = por %p187, %p188
      %p190 = scmp.ne.s32.totalorder %s182, %s185
      %p191 = scmp.eq.s32.totalorder %s18, 0
      %p192 = por %p190, %p191
      %p193 = scmp.ne.s32.totalorder %s182, %s185
      %p194 = scmp.eq.s32.totalorder %s23, 1
      %p195 = por %p193, %p194
      %p196 = scmp.ne.s32.totalorder %s185, %s186
      %p197 = scmp.eq.s32.totalorder %s23, 0
      %p198 = por %p196, %p197
      %p199 = scmp.ne.s32.totalorder %s185, %s186
      %p200 = scmp.eq.s32.totalorder %s24, 1
      %p201 = por %p199, %p200
      %p203 = scmp.ne.s32.totalorder %s186, %s202
      %p204 = scmp.eq.s32.totalorder %s24, 0
      %p205 = por %p203, %p204
      %p206 = scmp.le.s32.totalorder 1, %s18
      %p207 = scmp.lt.s32.totalorder %s18, 3
      %p208 = pnand %p206, %p207
      %p209 = pneg %p208
      // Predicated region
      $region9: #{tpu_custom_call.1} parent=5 // pred_check
        _
      $region10: #{tpu_custom_call.1} parent=5 // pred_check_branch
        %211 = sbr.rel (%p208) target = $region12
      $region11: #{tpu_custom_call.1} parent=5 // pred_region
        %s212 = ssub.s32 %s18, 1
        // Predicated region
        $region13: #{tpu_custom_call.1} parent=11 // pred_check
          %p213 = pneg %p107
        $region14: #{tpu_custom_call.1} parent=11 // pred_check_branch
          %215 = sbr.rel (%p213) target = $region16
        $region15: #{tpu_custom_call.1} parent=11 // pred_region
          _
        $region16: #{tpu_custom_call.1} parent=11 // pred_fallthru
          _
        // Predicated region
        $region17: #{tpu_custom_call.1} parent=11 // pred_check
          %p216 = pneg %p128
        $region18: #{tpu_custom_call.1} parent=11 // pred_check_branch
          %218 = sbr.rel (%p216) target = $region20
        $region19: #{tpu_custom_call.1} parent=11 // pred_region
          _
        $region20: #{tpu_custom_call.1} parent=11 // pred_fallthru
          _
        // Predicated region
        $region21: #{tpu_custom_call.1} parent=11 // pred_check
          %p219 = pneg %p149
        $region22: #{tpu_custom_call.1} parent=11 // pred_check_branch
          %221 = sbr.rel (%p219) target = $region24
        $region23: #{tpu_custom_call.1} parent=11 // pred_region
          _
        $region24: #{tpu_custom_call.1} parent=11 // pred_fallthru
          _
        // Predicated region
        $region25: #{tpu_custom_call.1} parent=11 // pred_check
          %p222 = pneg %p170
        $region26: #{tpu_custom_call.1} parent=11 // pred_check_branch
          %224 = sbr.rel (%p222) target = $region28
        $region27: #{tpu_custom_call.1} parent=11 // pred_region
          _
        $region28: #{tpu_custom_call.1} parent=11 // pred_fallthru
          _
      $region12: #{tpu_custom_call.1} parent=5 // pred_fallthru
        _
      %p225 = scmp.lt.s32.totalorder %s18, 2
      // Predicated region
      $region29: #{tpu_custom_call.1} parent=5 // pred_check
        %p226 = pneg %p225
      $region30: #{tpu_custom_call.1} parent=5 // pred_check_branch
        %228 = sbr.rel (%p226) target = $region32
      $region31: #{tpu_custom_call.1} parent=5 // pred_region
        // Predicated region
        $region33: #{tpu_custom_call.1} parent=31 // pred_check
          %p229 = pneg %p52
        $region34: #{tpu_custom_call.1} parent=31 // pred_check_branch
          %231 = sbr.rel (%p229) target = $region36
        $region35: #{tpu_custom_call.1} parent=31 // pred_region
          %s232 = smul.u32 2, %s26
          %p233 = scmp.lt.s32.totalorder %s25, 1
          %s234 = scalar_select %p233, %s25, 1
          %p235 = scmp.lt.s32.totalorder %s232, 1
          %s236 = scalar_select %p235, %s232, 1
          %s237 = smul.addr %s234, 2
          %s238 = sadd.s32 %s236, %s237
          %s239 = smul.addr %s238, 4
          %s240 = scalar_lea.vmem %s0, %s239
          %s241 = smul.u32 2, %s26
        $region36: #{tpu_custom_call.1} parent=31 // pred_fallthru
          _
        // Predicated region
        $region37: #{tpu_custom_call.1} parent=31 // pred_check
          %p242 = pneg %p80
        $region38: #{tpu_custom_call.1} parent=31 // pred_check_branch
          %244 = sbr.rel (%p242) target = $region40
        $region39: #{tpu_custom_call.1} parent=31 // pred_region
          %s245 = sand.u32 %s70, 1
          %s246 = scalar_lea.sflag [#allocation3], %s245
          %s247 = sand.u32 %s70, 1
          %s248 = smul.addr %s247, 64
          %s249 = scalar_lea.vmem [#allocation2], %s248
          %s250 = smul.u32 2, %s26
          %252 = vsyncadd %s246, 0
          %s253 = smul.addr %s25, 8
          %s254 = sadd.s32 %s250, %s253
          %s255 = smul.addr %s254, 8
          %s256 = scalar_lea.hbm %s1, %s255
          %s257 = sshll.u32 %s256, 4
          %s258 = int_to_ptr.hbm [resolvable:$true] %s257
          %s259 = sshll.u32 %s249, 4
          %s260 = int_to_ptr.vmem [resolvable:$true] %s259
          %265 = dma.hbm_to_vmem [thread:$0]  %s258, 1024, %s260, %s246, 256, 256, 16
        $region40: #{tpu_custom_call.1} parent=31 // pred_fallthru
          _
      $region32: #{tpu_custom_call.1} parent=5 // pred_fallthru
        _
      %p266 = scmp.le.s32.totalorder 1, %s18
      %p267 = scmp.lt.s32.totalorder %s18, 3
      %p268 = pnand %p266, %p267
      %p269 = pneg %p268
      // Predicated region
      $region41: #{tpu_custom_call.1} parent=5 // pred_check
        _
      $region42: #{tpu_custom_call.1} parent=5 // pred_check_branch
        %271 = sbr.rel (%p268) target = $region44
      $region43: #{tpu_custom_call.1} parent=5 // pred_region
        %s272 = ssub.s32 %s18, 1
        %s273 = sand.u32 %s73, 1
        %s274 = scalar_lea.sflag [#allocation3], %s273
        %s275 = sand.u32 %s73, 1
        %s276 = smul.addr %s275, 64
        %s277 = scalar_lea.vmem [#allocation2], %s276
        // Predicated region
        $region45: #{tpu_custom_call.1} parent=43 // pred_check
          %p278 = pneg %p86
        $region46: #{tpu_custom_call.1} parent=43 // pred_check_branch
          %280 = sbr.rel (%p278) target = $region48
        $region47: #{tpu_custom_call.1} parent=43 // pred_region
          %282 = dma.done %s274, 1024
        $region48: #{tpu_custom_call.1} parent=43 // pred_fallthru
          _
        %s283 = smul.u32 2, %s28
        %p284 = scmp.lt.s32.totalorder %s27, 1
        %s285 = scalar_select %p284, %s27, 1
        %p286 = scmp.lt.s32.totalorder %s283, 1
        %s287 = scalar_select %p286, %s283, 1
        %s288 = smul.addr %s285, 2
        %s289 = sadd.s32 %s287, %s288
        %s290 = smul.addr %s289, 4
        %s291 = scalar_lea.vmem %s0, %s290
        %p292 = pneg %p58
        %p293 = pneg %p55
        %s294 = sand.u32 %s73, 1
        %s295 = scalar_lea.sflag [#allocation3], %s294
        %s296 = sand.u32 %s73, 1
        %s297 = smul.addr %s296, 64
        %s298 = scalar_lea.vmem [#allocation2], %s297
        %p299 = pneg %p86
        %p300 = pneg %p83
        %p301 = pneg %p107
        %p302 = pneg %p104
        %p303 = pneg %p128
        %p304 = pneg %p125
        %p305 = pneg %p149
        %p306 = pneg %p146
        %p307 = pneg %p170
        %p308 = pneg %p167
        %p309 = pneg %p198
        %p310 = pneg %p195
        %s311 = sand.u32 %s185, 1
        %s312 = scalar_lea.sflag [#allocation4], %s311
        %s313 = sand.u32 %s185, 1
        %s314 = smul.addr %s313, 64
        %s315 = scalar_lea.vmem [#allocation5], %s314
        %s316 = smul.u32 2, %s28
        %p317 = scmp.lt.s32.totalorder %s27, 1
        %s318 = scalar_select %p317, %s27, 1
        %p319 = scmp.lt.s32.totalorder %s316, 1
        %s320 = scalar_select %p319, %s316, 1
        %s321 = smul.addr %s318, 2
        %s322 = sadd.s32 %s320, %s321
        %s323 = smul.addr %s322, 4
        %s324 = scalar_lea.vmem %s0, %s323
        %s325 = smul.u32 2, %s28
        %s326 = smul.u32 2, %s28
        %s327 = smul.u32 2, %s28
        %v328 = vld [vmem:[%s2] sm:$0xff]
        %v329 = vld [vmem:[%s2 + $0x8] sm:$0xff]
        %v330 = vld [vmem:[%s2 + $0x10] sm:$0xff]
        %v331 = vld [vmem:[%s2 + $0x18] sm:$0xff]
        %v332 = vld [vmem:[%s2 + $0x20] sm:$0xff]
        %v333 = vld [vmem:[%s2 + $0x28] sm:$0xff]
        %v334 = vld [vmem:[%s2 + $0x30] sm:$0xff]
        %v335 = vld [vmem:[%s2 + $0x38] sm:$0xff]
        %v336 = vld [vmem:[%s3] sm:$0xff]
        %v337 = vld [vmem:[%s3 + $0x8] sm:$0xff]
        %v338 = vld [vmem:[%s3 + $0x10] sm:$0xff]
        %v339 = vld [vmem:[%s3 + $0x18] sm:$0xff]
        %v340 = vld [vmem:[%s4] sm:$0xff]
        %v341 = vld [vmem:[%s4 + $0x8] sm:$0xff]
        %v342 = vld [vmem:[%s4 + $0x10] sm:$0xff]
        %v343 = vld [vmem:[%s4 + $0x18] sm:$0xff]
        %v344 = vld [vmem:[%s5] sm:$0xff]
        %v345 = vld [vmem:[%s5 + $0x8] sm:$0xff]
        %v346 = vld [vmem:[%s5 + $0x10] sm:$0xff]
        %v347 = vld [vmem:[%s5 + $0x18] sm:$0xff]
        %v348 = vld [vmem:[%s324] sm:$0xf]
        %v349 = vld [vmem:[%s277] sm:$0xff]
        %v350 = vld [vmem:[%s277 + $0x10] sm:$0xff]
        %v351 = vld [vmem:[%s277 + $0x20] sm:$0xff]
        %v352 = vld [vmem:[%s277 + $0x30] sm:$0xff]
        %vm353 = vcmask 31744
        %v355 = vsel %vm353, %v328, 0
        %v358 = vsel %vm353, %v329, 0
        %v361 = vsel %vm353, %v330, 0
        %v364 = vsel %vm353, %v331, 0
        %v367 = vsel %vm353, %v332, 0
        %v370 = vsel %vm353, %v333, 0
        %v373 = vsel %vm353, %v334, 0
        %v376 = vsel %vm353, %v335, 0
        %vm378 = vcmask 1043456
        %v380 = vsel %vm378, %v348, 0
        %382 = vmatpush.msra.mxu0 0.0
        %383 = vmatpush.msra.mxu0 0.0
        %384 = vmatpush.msra.mxu0 0.0
        %385 = vmatpush.msra.mxu0 0.0
        %386 = vmatpush.msra.mxu0 0.0
        %387 = vmatpush.msra.mxu0 0.0
        %388 = vmatpush.msra.mxu0 0.0
        %389 = vmatpush.msra.mxu0 0.0
        %390 = vmatpush.msra.mxu0 0.0
        %391 = vmatpush.msra.mxu0 0.0
        %392 = vmatpush.msra.mxu0 0.0
        %393 = vmatpush.msra.mxu0 0.0
        %394 = vmatpush.msra.mxu0 0.0
        %395 = vmatpush.msra.mxu0 0.0
        %396 = vmatpush.msra.mxu0 0.0
        %397 = vmatpush.msra.mxu0 %v380
        %398 = vmatmul.f32.gmra.mxu0 %v355
        %v399 = vpop.f32.mrf.mxu0
        %v400 = vadd.f32 0.0, %v399
        %401 = vmatmul.f32.gmra.mxu0 %v358
        %v402 = vpop.f32.mrf.mxu0
        %v403 = vadd.f32 0.0, %v402
        %404 = vmatmul.f32.gmra.mxu0 %v361
        %v405 = vpop.f32.mrf.mxu0
        %v406 = vadd.f32 0.0, %v405
        %407 = vmatmul.f32.gmra.mxu0 %v364
        %v408 = vpop.f32.mrf.mxu0
        %v409 = vadd.f32 0.0, %v408
        %410 = vmatmul.f32.gmra.mxu0 %v367
        %v411 = vpop.f32.mrf.mxu0
        %v412 = vadd.f32 0.0, %v411
        %413 = vmatmul.f32.gmra.mxu0 %v370
        %v414 = vpop.f32.mrf.mxu0
        %v415 = vadd.f32 0.0, %v414
        %416 = vmatmul.f32.gmra.mxu0 %v373
        %v417 = vpop.f32.mrf.mxu0
        %v418 = vadd.f32 0.0, %v417
        %419 = vmatmul.f32.gmra.mxu0 %v376
        %v420 = vpop.f32.mrf.mxu0
        %v421 = vadd.f32 0.0, %v420
        %422 = vdwg.mxu0
        %vm423 = vcmask 261120
        %v425 = vsel %vm423, %v336, 0
        %v428 = vsel %vm423, %v337, 0
        %v431 = vsel %vm423, %v338, 0
        %v434 = vsel %vm423, %v339, 0
        %436 = vmatpush.msra.mxu0 0.0
        %437 = vmatpush.msra.mxu0 0.0
        %438 = vmatpush.msra.mxu0 0.0
        %439 = vmatpush.msra.mxu0 0.0
        %440 = vmatpush.msra.mxu0 0.0
        %441 = vmatpush.msra.mxu0 0.0
        %442 = vmatpush.msra.mxu0 0.0
        %443 = vmatpush.msra.mxu0 0.0
        %444 = vmatpush.msra.mxu0 0.0
        %445 = vmatpush.msra.mxu0 0.0
        %446 = vmatpush.msra.mxu0 0.0
        %447 = vmatpush.msra.mxu0 0.0
        %448 = vmatpush.msra.mxu0 %v352
        %449 = vmatpush.msra.mxu0 %v351
        %450 = vmatpush.msra.mxu0 %v350
        %451 = vmatpush.msra.mxu0 %v349
        %452 = vmatmul.f32.gmra.mxu0 %v425
        %v453 = vpop.f32.mrf.mxu0
        %v454 = vadd.f32 0.0, %v453
        %455 = vmatmul.f32.gmra.mxu0 %v428
        %v456 = vpop.f32.mrf.mxu0
        %v457 = vadd.f32 0.0, %v456
        %458 = vmatmul.f32.gmra.mxu0 %v431
        %v459 = vpop.f32.mrf.mxu0
        %v460 = vadd.f32 0.0, %v459
        %461 = vmatmul.f32.gmra.mxu0 %v434
        %v462 = vpop.f32.mrf.mxu0
        %v463 = vadd.f32 0.0, %v462
        %464 = vdwg.mxu0
        %v465 = vadd.f32 %v400, %v454
        %v466 = vadd.f32 %v403, %v457
        %v467 = vadd.f32 %v406, %v460
        %v468 = vadd.f32 %v409, %v463
        %470 = vset.pattern.permute.xlu0 0
        %471 = vperm.xlu0 %470, %v344
        %v472 = vpop.permute.xlu0 %471
        %475 = vset.pattern.permute.xlu0 0
        %476 = vperm.xlu0 %475, %v345
        %v477 = vpop.permute.xlu0 %476
        %480 = vset.pattern.permute.xlu0 0
        %481 = vperm.xlu0 %480, %v346
        %v482 = vpop.permute.xlu0 %481
        %485 = vset.pattern.permute.xlu0 0
        %486 = vperm.xlu0 %485, %v347
        %v487 = vpop.permute.xlu0 %486
        %v489 = vadd.f32 %v465, %v472
        %v490 = vadd.f32 %v466, %v477
        %v491 = vadd.f32 %v467, %v482
        %v492 = vadd.f32 %v468, %v487
        %v493 = vtanh.pop %v489
        %v494 = vtanh.pop %v490
        %v495 = vtanh.pop %v491
        %v496 = vtanh.pop %v492
        %v497 = vmul.f32 %v493, 0.5
        %v498 = vmul.f32 %v494, 0.5
        %v499 = vmul.f32 %v495, 0.5
        %v500 = vmul.f32 %v496, 0.5
        %v501 = vadd.f32 %v497, 0.5
        %v502 = vadd.f32 %v498, 0.5
        %v503 = vadd.f32 %v499, 0.5
        %v504 = vadd.f32 %v500, 0.5
        %v505 = vmul.f32 %v349, %v501
        %v506 = vmul.f32 %v350, %v502
        %v507 = vmul.f32 %v351, %v503
        %v508 = vmul.f32 %v352, %v504
        %v510 = vsel %vm423, %v340, 0
        %v513 = vsel %vm423, %v341, 0
        %v516 = vsel %vm423, %v342, 0
        %v519 = vsel %vm423, %v343, 0
        %521 = vmatpush.msra.mxu0 0.0
        %522 = vmatpush.msra.mxu0 0.0
        %523 = vmatpush.msra.mxu0 0.0
        %524 = vmatpush.msra.mxu0 0.0
        %525 = vmatpush.msra.mxu0 0.0
        %526 = vmatpush.msra.mxu0 0.0
        %527 = vmatpush.msra.mxu0 0.0
        %528 = vmatpush.msra.mxu0 0.0
        %529 = vmatpush.msra.mxu0 0.0
        %530 = vmatpush.msra.mxu0 0.0
        %531 = vmatpush.msra.mxu0 0.0
        %532 = vmatpush.msra.mxu0 0.0
        %533 = vmatpush.msra.mxu0 %v508
        %534 = vmatpush.msra.mxu0 %v507
        %535 = vmatpush.msra.mxu0 %v506
        %536 = vmatpush.msra.mxu0 %v505
        %537 = vmatmul.f32.gmra.mxu0 %v510
        %v538 = vpop.f32.mrf.mxu0
        %v539 = vadd.f32 0.0, %v538
        %540 = vmatmul.f32.gmra.mxu0 %v513
        %v541 = vpop.f32.mrf.mxu0
        %v542 = vadd.f32 0.0, %v541
        %543 = vmatmul.f32.gmra.mxu0 %v516
        %v544 = vpop.f32.mrf.mxu0
        %v545 = vadd.f32 0.0, %v544
        %546 = vmatmul.f32.gmra.mxu0 %v519
        %v547 = vpop.f32.mrf.mxu0
        %v548 = vadd.f32 0.0, %v547
        %549 = vdwg.mxu0
        %v550 = vadd.f32 %v412, %v539
        %v551 = vadd.f32 %v415, %v542
        %v552 = vadd.f32 %v418, %v545
        %v553 = vadd.f32 %v421, %v548
        %554 = vset.pattern.permute.xlu0 1
        %555 = vperm.xlu0 %554, %v344
        %v556 = vpop.permute.xlu0 %555
        %558 = vset.pattern.permute.xlu0 1
        %559 = vperm.xlu0 %558, %v345
        %v560 = vpop.permute.xlu0 %559
        %562 = vset.pattern.permute.xlu0 1
        %563 = vperm.xlu0 %562, %v346
        %v564 = vpop.permute.xlu0 %563
        %566 = vset.pattern.permute.xlu0 1
        %567 = vperm.xlu0 %566, %v347
        %v568 = vpop.permute.xlu0 %567
        %v570 = vadd.f32 %v550, %v556
        %v571 = vadd.f32 %v551, %v560
        %v572 = vadd.f32 %v552, %v564
        %v573 = vadd.f32 %v553, %v568
        %v574 = vtanh.pop %v570
        %v575 = vtanh.pop %v571
        %v576 = vtanh.pop %v572
        %v577 = vtanh.pop %v573
        %v578 = vsub.f32 %v574, %v349
        %v579 = vsub.f32 %v575, %v350
        %v580 = vsub.f32 %v576, %v351
        %v581 = vsub.f32 %v577, %v352
        %v582 = vmul.f32 %v501, %v578
        %v583 = vmul.f32 %v502, %v579
        %v584 = vmul.f32 %v503, %v580
        %v585 = vmul.f32 %v504, %v581
        %v586 = vadd.f32 %v349, %v582
        %v587 = vadd.f32 %v350, %v583
        %v588 = vadd.f32 %v351, %v584
        %v589 = vadd.f32 %v352, %v585
        %590 = vst [vmem:[%s315] sm:$0xff] %v586
        %591 = vst [vmem:[%s315 + $0x10] sm:$0xff] %v587
        %592 = vst [vmem:[%s315 + $0x20] sm:$0xff] %v588
        %593 = vst [vmem:[%s315 + $0x30] sm:$0xff] %v589
        %v594 = vld [vmem:[%s324 + $0x4] sm:$0xf]
        %v595 = vld [vmem:[%s277 + $0x8] sm:$0xff]
        %v596 = vld [vmem:[%s277 + $0x18] sm:$0xff]
        %v597 = vld [vmem:[%s277 + $0x28] sm:$0xff]
        %v598 = vld [vmem:[%s277 + $0x38] sm:$0xff]
        %v600 = vsel %vm378, %v594, 0
        %602 = vmatpush.msra.mxu0 0.0
        %603 = vmatpush.msra.mxu0 0.0
        %604 = vmatpush.msra.mxu0 0.0
        %605 = vmatpush.msra.mxu0 0.0
        %606 = vmatpush.msra.mxu0 0.0
        %607 = vmatpush.msra.mxu0 0.0
        %608 = vmatpush.msra.mxu0 0.0
        %609 = vmatpush.msra.mxu0 0.0
        %610 = vmatpush.msra.mxu0 0.0
        %611 = vmatpush.msra.mxu0 0.0
        %612 = vmatpush.msra.mxu0 0.0
        %613 = vmatpush.msra.mxu0 0.0
        %614 = vmatpush.msra.mxu0 0.0
        %615 = vmatpush.msra.mxu0 0.0
        %616 = vmatpush.msra.mxu0 0.0
        %617 = vmatpush.msra.mxu0 %v600
        %618 = vmatmul.f32.gmra.mxu0 %v355
        %v619 = vpop.f32.mrf.mxu0
        %v620 = vadd.f32 0.0, %v619
        %621 = vmatmul.f32.gmra.mxu0 %v358
        %v622 = vpop.f32.mrf.mxu0
        %v623 = vadd.f32 0.0, %v622
        %624 = vmatmul.f32.gmra.mxu0 %v361
        %v625 = vpop.f32.mrf.mxu0
        %v626 = vadd.f32 0.0, %v625
        %627 = vmatmul.f32.gmra.mxu0 %v364
        %v628 = vpop.f32.mrf.mxu0
        %v629 = vadd.f32 0.0, %v628
        %630 = vmatmul.f32.gmra.mxu0 %v367
        %v631 = vpop.f32.mrf.mxu0
        %v632 = vadd.f32 0.0, %v631
        %633 = vmatmul.f32.gmra.mxu0 %v370
        %v634 = vpop.f32.mrf.mxu0
        %v635 = vadd.f32 0.0, %v634
        %636 = vmatmul.f32.gmra.mxu0 %v373
        %v637 = vpop.f32.mrf.mxu0
        %v638 = vadd.f32 0.0, %v637
        %639 = vmatmul.f32.gmra.mxu0 %v376
        %v640 = vpop.f32.mrf.mxu0
        %v641 = vadd.f32 0.0, %v640
        %642 = vdwg.mxu0
        %643 = vmatpush.msra.mxu0 0.0
        %644 = vmatpush.msra.mxu0 0.0
        %645 = vmatpush.msra.mxu0 0.0
        %646 = vmatpush.msra.mxu0 0.0
        %647 = vmatpush.msra.mxu0 0.0
        %648 = vmatpush.msra.mxu0 0.0
        %649 = vmatpush.msra.mxu0 0.0
        %650 = vmatpush.msra.mxu0 0.0
        %651 = vmatpush.msra.mxu0 0.0
        %652 = vmatpush.msra.mxu0 0.0
        %653 = vmatpush.msra.mxu0 0.0
        %654 = vmatpush.msra.mxu0 0.0
        %655 = vmatpush.msra.mxu0 %v598
        %656 = vmatpush.msra.mxu0 %v597
        %657 = vmatpush.msra.mxu0 %v596
        %658 = vmatpush.msra.mxu0 %v595
        %659 = vmatmul.f32.gmra.mxu0 %v425
        %v660 = vpop.f32.mrf.mxu0
        %v661 = vadd.f32 0.0, %v660
        %662 = vmatmul.f32.gmra.mxu0 %v428
        %v663 = vpop.f32.mrf.mxu0
        %v664 = vadd.f32 0.0, %v663
        %665 = vmatmul.f32.gmra.mxu0 %v431
        %v666 = vpop.f32.mrf.mxu0
        %v667 = vadd.f32 0.0, %v666
        %668 = vmatmul.f32.gmra.mxu0 %v434
        %v669 = vpop.f32.mrf.mxu0
        %v670 = vadd.f32 0.0, %v669
        %671 = vdwg.mxu0
        %v672 = vadd.f32 %v620, %v661
        %v673 = vadd.f32 %v623, %v664
        %v674 = vadd.f32 %v626, %v667
        %v675 = vadd.f32 %v629, %v670
        %v676 = vadd.f32 %v672, %v472
        %v677 = vadd.f32 %v673, %v477
        %v678 = vadd.f32 %v674, %v482
        %v679 = vadd.f32 %v675, %v487
        %v680 = vtanh.pop %v676
        %v681 = vtanh.pop %v677
        %v682 = vtanh.pop %v678
        %v683 = vtanh.pop %v679
        %v684 = vmul.f32 %v680, 0.5
        %v685 = vmul.f32 %v681, 0.5
        %v686 = vmul.f32 %v682, 0.5
        %v687 = vmul.f32 %v683, 0.5
        %v688 = vadd.f32 %v684, 0.5
        %v689 = vadd.f32 %v685, 0.5
        %v690 = vadd.f32 %v686, 0.5
        %v691 = vadd.f32 %v687, 0.5
        %v692 = vmul.f32 %v595, %v688
        %v693 = vmul.f32 %v596, %v689
        %v694 = vmul.f32 %v597, %v690
        %v695 = vmul.f32 %v598, %v691
        %696 = vmatpush.msra.mxu0 0.0
        %697 = vmatpush.msra.mxu0 0.0
        %698 = vmatpush.msra.mxu0 0.0
        %699 = vmatpush.msra.mxu0 0.0
        %700 = vmatpush.msra.mxu0 0.0
        %701 = vmatpush.msra.mxu0 0.0
        %702 = vmatpush.msra.mxu0 0.0
        %703 = vmatpush.msra.mxu0 0.0
        %704 = vmatpush.msra.mxu0 0.0
        %705 = vmatpush.msra.mxu0 0.0
        %706 = vmatpush.msra.mxu0 0.0
        %707 = vmatpush.msra.mxu0 0.0
        %708 = vmatpush.msra.mxu0 %v695
        %709 = vmatpush.msra.mxu0 %v694
        %710 = vmatpush.msra.mxu0 %v693
        %711 = vmatpush.msra.mxu0 %v692
        %712 = vmatmul.f32.gmra.mxu0 %v510
        %v713 = vpop.f32.mrf.mxu0
        %v714 = vadd.f32 0.0, %v713
        %715 = vmatmul.f32.gmra.mxu0 %v513
        %v716 = vpop.f32.mrf.mxu0
        %v717 = vadd.f32 0.0, %v716
        %718 = vmatmul.f32.gmra.mxu0 %v516
        %v719 = vpop.f32.mrf.mxu0
        %v720 = vadd.f32 0.0, %v719
        %721 = vmatmul.f32.gmra.mxu0 %v519
        %v722 = vpop.f32.mrf.mxu0
        %v723 = vadd.f32 0.0, %v722
        %724 = vdwg.mxu0
        %v725 = vadd.f32 %v632, %v714
        %v726 = vadd.f32 %v635, %v717
        %v727 = vadd.f32 %v638, %v720
        %v728 = vadd.f32 %v641, %v723
        %v729 = vadd.f32 %v725, %v556
        %v730 = vadd.f32 %v726, %v560
        %v731 = vadd.f32 %v727, %v564
        %v732 = vadd.f32 %v728, %v568
        %v733 = vtanh.pop %v729
        %v734 = vtanh.pop %v730
        %v735 = vtanh.pop %v731
        %v736 = vtanh.pop %v732
        %v737 = vsub.f32 %v733, %v595
        %v738 = vsub.f32 %v734, %v596
        %v739 = vsub.f32 %v735, %v597
        %v740 = vsub.f32 %v736, %v598
        %v741 = vmul.f32 %v688, %v737
        %v742 = vmul.f32 %v689, %v738
        %v743 = vmul.f32 %v690, %v739
        %v744 = vmul.f32 %v691, %v740
        %v745 = vadd.f32 %v595, %v741
        %v746 = vadd.f32 %v596, %v742
        %v747 = vadd.f32 %v597, %v743
        %v748 = vadd.f32 %v598, %v744
        %749 = vst [vmem:[%s315 + $0x8] sm:$0xff] %v745
        %750 = vst [vmem:[%s315 + $0x18] sm:$0xff] %v746
        %751 = vst [vmem:[%s315 + $0x28] sm:$0xff] %v747
        %752 = vst [vmem:[%s315 + $0x38] sm:$0xff] %v748
        %s753 = sand.u32 %s185, 1
        %s754 = scalar_lea.sflag [#allocation4], %s753
        %s755 = sand.u32 %s185, 1
        %s756 = smul.addr %s755, 64
        %s757 = scalar_lea.vmem [#allocation5], %s756
        // Predicated region
        $region49: #{tpu_custom_call.1} parent=43 // pred_check
          %p758 = pneg %p195
        $region50: #{tpu_custom_call.1} parent=43 // pred_check_branch
          %760 = sbr.rel (%p758) target = $region52
        $region51: #{tpu_custom_call.1} parent=43 // pred_region
          %s761 = smul.u32 2, %s28
          %763 = vsyncadd %s754, 0
          %s764 = smul.addr %s27, 8
          %s765 = sadd.s32 %s761, %s764
          %s766 = smul.addr %s765, 8
          %s767 = scalar_lea.hbm %s6, %s766
          %s768 = sshll.u32 %s757, 4
          %s769 = int_to_ptr.vmem [resolvable:$true] %s768
          %s770 = sshll.u32 %s767, 4
          %s771 = int_to_ptr.hbm [resolvable:$true] %s770
          %776 = dma.vmem_to_hbm [thread:$0]  %s769, 1024, %s771, %s754, 256, 256, 16
        $region52: #{tpu_custom_call.1} parent=43 // pred_fallthru
          _
      $region44: #{tpu_custom_call.1} parent=5 // pred_fallthru
        _
      %p777 = scmp.le.s32.totalorder 2, %s18
      // Predicated region
      $region53: #{tpu_custom_call.1} parent=5 // pred_check
        %p778 = pneg %p777
      $region54: #{tpu_custom_call.1} parent=5 // pred_check_branch
        %780 = sbr.rel (%p778) target = $region56
      $region55: #{tpu_custom_call.1} parent=5 // pred_region
        %s781 = ssub.s32 %s18, 2
        // Predicated region
        $region57: #{tpu_custom_call.1} parent=55 // pred_check
          %p782 = pneg %p201
        $region58: #{tpu_custom_call.1} parent=55 // pred_check_branch
          %784 = sbr.rel (%p782) target = $region60
        $region59: #{tpu_custom_call.1} parent=55 // pred_region
          %s785 = sand.u32 %s186, 1
          %s786 = scalar_lea.sflag [#allocation4], %s785
          %s787 = sand.u32 %s186, 1
          %s788 = smul.addr %s787, 64
          %s789 = scalar_lea.vmem [#allocation5], %s788
          %791 = dma.done %s786, 1024
        $region60: #{tpu_custom_call.1} parent=55 // pred_fallthru
          _
      $region56: #{tpu_custom_call.1} parent=5 // pred_fallthru
        _
    $region6: #{tpu_custom_call.1} parent=1 // loop_footer
      %s22 = sadd.s32 1, %s18
    $region7: #{tpu_custom_call.1} parent=1 // loop_footer_branch
      %17 = sbr.rel target = $region3
    $region8: #{tpu_custom_call.1} parent=1 // loop_exit
      _
    %792 = vsyncpa [#allocation3], 1
    %s793 = scalar_lea.sflag [#allocation3], 1
    %794 = vsyncpa %s793, 1
    %795 = vsyncpa [#allocation4], 1
    %s796 = scalar_lea.sflag [#allocation4], 1
    %797 = vsyncpa %s796, 1

</llo_original>
